<compile_context>
chip_gen: v7x
topology: tpu7x:2x2x1
jax: 0.10.0
libtpu: 0.0.40
codegen_flags: <defaults>
</compile_context>

<pallas_src>
import functools
import math

import jax
import jax.numpy as jnp
from jax.experimental import pallas as pl
from jax.experimental.pallas import tpu as pltpu


def _round_up(x, m):
    return ((x + m - 1) // m) * m


def _tpu_defaults():
    """Per-generation tile defaults and VMEM budgets (bytes)."""
    kind = ""
    try:
        kind = jax.devices()[0].device_kind.lower()
    except Exception:
        pass
    if "v7" in kind or "7x" in kind:
        # 64 MiB VMEM per TensorCore, 2 TCs/chip.
        return dict(tm=1024, tn=1024, tk=512, vmem_limit=44 << 20,
                    budget=36 << 20, cores=2)
    if "v6" in kind:
        return dict(tm=1024, tn=1024, tk=512, vmem_limit=48 << 20,
                    budget=40 << 20, cores=1)
    if "v5" in kind:
        return dict(tm=512, tn=512, tk=512, vmem_limit=32 << 20,
                    budget=26 << 20, cores=1)
    # Unknown / older generation: conservative.
    return dict(tm=512, tn=512, tk=512, vmem_limit=32 << 20,
                budget=26 << 20, cores=1)


def _clamp_tile(dim, tile, align):
    """Largest multiple of `align` <= tile, or the full dim if tile covers it."""
    if tile >= dim or align >= dim:
        return dim
    t = max(align, (tile // align) * align)
    return dim if t >= dim else t


def _pick_tk(k_pad, tk_max):
    """Largest multiple of 128 that divides k_pad and is <= tk_max (min 128)."""
    best = 128
    t = 128
    while t <= min(tk_max, k_pad):
        if k_pad % t == 0:
            best = t
        t += 128
    return best


# ------------------------------ kernels ------------------------------------

def _mm_noacc_kernel(x_ref, w_ref, o_ref):
    """Single K block: write straight to output (no scratch)."""
    o_ref[...] = jnp.dot(
        x_ref[...], w_ref[...], preferred_element_type=jnp.float32
    ).astype(o_ref.dtype)


def _mm_acc_inplace_kernel(x_ref, w_ref, o_ref):
    """K-tiled matmul, f32 output: accumulate directly into the resident o block."""
    @pl.when(pl.program_id(2) == 0)
    def _():
        o_ref[...] = jnp.zeros_like(o_ref)

    o_ref[...] += jnp.dot(
        x_ref[...], w_ref[...], preferred_element_type=jnp.float32
    )


def _mm_acc_scratch_kernel(x_ref, w_ref, o_ref, acc_ref):
    """K-tiled matmul with f32 VMEM accumulator (non-f32 outputs)."""
    @pl.when(pl.program_id(2) == 0)
    def _():
        acc_ref[...] = jnp.zeros_like(acc_ref)

    acc_ref[...] += jnp.dot(
        x_ref[...], w_ref[...], preferred_element_type=jnp.float32
    )

    @pl.when(pl.program_id(2) == pl.num_programs(2) - 1)
    def _():
        o_ref[...] = acc_ref[...].astype(o_ref.dtype)


# ------------------------------ wrapper -------------------------------------

# Below this many MACs, pallas_call launch overhead dwarfs the compute.
_SMALL_SHAPE_MACS = 256 * 256 * 256
_RESIDENT_W_BYTES = 8 << 20  # keep W resident in VMEM when it fits this budget


def linear_norm(x, weight_t, *, tm=None, tn=None, tk=None,
                compute_dtype=None, force_pallas=False, allow_resident=True):
    """y = x @ weight_t   (weight_t shape: (in_features, out_features)).

    compute_dtype: optional dtype (e.g. jnp.bfloat16) for the MXU operands;
      accumulation stays f32 and the output keeps x.dtype.
    Call under jax.jit so the (rare) K-pad / dtype cast fuse with the kernel.
    """
    *lead, K = x.shape
    Kw, N = weight_t.shape
    assert K == Kw, f"in_features mismatch: {K} vs {Kw}"
    M = math.prod(lead) if lead else 1
    x2d = x.reshape(M, K)
    out_dtype = x.dtype
    out_size = jnp.dtype(out_dtype).itemsize

    # Tiny shapes: let XLA handle it (launch overhead dominates).
    if not force_pallas and (M * N * K) < _SMALL_SHAPE_MACS:
        return (x2d @ weight_t).astype(out_dtype).reshape(*lead, N)

    cfg = _tpu_defaults()
    budget = cfg["budget"]
    vmem_limit = cfg["vmem_limit"]

    cd = jnp.dtype(compute_dtype) if compute_dtype is not None else jnp.dtype(x.dtype)
    cd_size = cd.itemsize
    sub = 8 if cd_size >= 4 else (16 if cd_size == 2 else 32)

    # --- K handling: only K must be exact (garbage K reads would corrupt valid
    #     outputs); pad K to a multiple of 128 when needed. M/N stay unpadded —
    #     Pallas masks the boundary blocks, and their garbage only lands in
    #     rows/cols that are never written back.
    K_pad = _round_up(K, 128)
    x_p = x2d if K_pad == K else jnp.pad(x2d, ((0, 0), (0, K_pad - K)))
    w_p = weight_t if K_pad == K else jnp.pad(weight_t, ((0, K_pad - K), (0, 0)))
    if x_p.dtype != cd:
        x_p = x_p.astype(cd)
    if w_p.dtype != cd:
        w_p = w_p.astype(cd)

    tm_d = tm if tm is not None else cfg["tm"]
    tn_d = tn if tn is not None else cfg["tn"]
    tk_d = tk if tk is not None else cfg["tk"]

    N_ceil = _round_up(N, 128)

    # ---------- Path A: weight resident in VMEM (common projection case) ------
    w_bytes = K_pad * N_ceil * cd_size
    if allow_resident and w_bytes <= _RESIDENT_W_BYTES:
        tm_r = _clamp_tile(M, _round_up(tm_d, sub), sub)

        def _fits(t):
            t8 = _round_up(t, 8)
            return (2 * t8 * K_pad * cd_size + 2 * w_bytes
                    + 2 * t8 * N_ceil * out_size) <= budget

        while not _fits(tm_r) and tm_r > sub:
            tm_r = _clamp_tile(M, max(sub, tm_r // 2), sub)

        if _fits(tm_r):
            gm = pl.cdiv(M, tm_r)
            # Keep both v7x TensorCores busy when possible.
            if cfg["cores"] >= 2 and gm < 2 and M >= 2 * sub:
                tm_r = _clamp_tile(M, _round_up(pl.cdiv(M, 2), sub), sub)
                gm = pl.cdiv(M, tm_r)

            cost = pl.CostEstimate(
                flops=2 * M * N * K_pad,
                transcendentals=0,
                bytes_accessed=(M * K_pad + K_pad * N) * cd_size
                + M * N * out_size,
            )
            out2d = pl.pallas_call(
                _mm_noacc_kernel,
                out_shape=jax.ShapeDtypeStruct((M, N), out_dtype),
                grid_spec=pltpu.PrefetchScalarGridSpec(
                    num_scalar_prefetch=0,
                    grid=(gm,),
                    in_specs=[
                        pl.BlockSpec((tm_r, K_pad), lambda i: (i, 0)),
                        pl.BlockSpec((K_pad, N), lambda i: (0, 0)),  # resident W
                    ],
                    out_specs=pl.BlockSpec((tm_r, N), lambda i: (i, 0)),
                ),
                compiler_params=pltpu.CompilerParams(
                    dimension_semantics=("parallel",),
                    vmem_limit_bytes=vmem_limit,
                ),
                cost_estimate=cost,
            )(x_p, w_p)
            return out2d.reshape(*lead, N)

    # ---------- Path B: general tiled matmul -----------------------------------
    tm_ = _clamp_tile(M, tm_d, sub)
    tn_ = _clamp_tile(N, tn_d, 128)
    tk_ = _pick_tk(K_pad, tk_d)

    def _vmem_bytes(a, b, c):
        a8 = _round_up(a, 8)
        b128 = _round_up(b, 128)
        c128 = _round_up(c, 128)
        return ((2 * a8 * c128 + 2 * c128 * b128) * cd_size
                + 2 * a8 * b128 * out_size
                + a8 * b128 * 4)  # conservative: assume an f32 accumulator

    while _vmem_bytes(tm_, tn_, tk_) > budget:
        if tn_ > 128 and tn_ >= tm_:
            tn_ = _clamp_tile(N, max(128, tn_ // 2), 128)
        elif tm_ > sub:
            tm_ = _clamp_tile(M, max(sub, tm_ // 2), sub)
        elif tk_ > 128:
            tk_ = _pick_tk(K_pad, max(128, tk_ // 2))
        else:
            break

    gk = K_pad // tk_
    gm = pl.cdiv(M, tm_)
    gn = pl.cdiv(N, tn_)

    # Keep both v7x TensorCores busy when possible.
    if cfg["cores"] >= 2 and gm == 1 and gn == 1 and M >= 2 * sub:
        tm_ = _clamp_tile(M, _round_up(pl.cdiv(M, 2), sub), sub)
        gm = pl.cdiv(M, tm_)

    cost = pl.CostEstimate(
        flops=2 * M * N * K_pad,
        transcendentals=0,
        bytes_accessed=(M * K_pad * gn + K_pad * N * gm) * cd_size
        + M * N * out_size,
    )

    if gk == 1:
        out2d = pl.pallas_call(
            _mm_noacc_kernel,
            out_shape=jax.ShapeDtypeStruct((M, N), out_dtype),
            grid_spec=pltpu.PrefetchScalarGridSpec(
                num_scalar_prefetch=0,
                grid=(gm, gn),
                in_specs=[
                    pl.BlockSpec((tm_, K_pad), lambda i, j: (i, 0)),
                    pl.BlockSpec((K_pad, tn_), lambda i, j: (0, j)),
                ],
                out_specs=pl.BlockSpec((tm_, tn_), lambda i, j: (i, j)),
            ),
            compiler_params=pltpu.CompilerParams(
                dimension_semantics=("parallel", "parallel"),
                vmem_limit_bytes=vmem_limit,
            ),
            cost_estimate=cost,
        )(x_p, w_p)
    else:
        if jnp.dtype(out_dtype) == jnp.dtype(jnp.float32):
            kernel = _mm_acc_inplace_kernel   # accumulate in the resident out block
            scratch = []
        else:
            kernel = _mm_acc_scratch_kernel
            scratch = [pltpu.VMEM((tm_, tn_), jnp.float32)]
        out2d = pl.pallas_call(
            kernel,
            out_shape=jax.ShapeDtypeStruct((M, N), out_dtype),
            grid_spec=pltpu.PrefetchScalarGridSpec(
                num_scalar_prefetch=0,
                grid=(gm, gn, gk),
                in_specs=[
                    pl.BlockSpec((tm_, tk_), lambda i, j, k: (i, k)),
                    pl.BlockSpec((tk_, tn_), lambda i, j, k: (k, j)),
                ],
                out_specs=pl.BlockSpec((tm_, tn_), lambda i, j, k: (i, j)),
                scratch_shapes=scratch,
            ),
            compiler_params=pltpu.CompilerParams(
                dimension_semantics=("parallel", "parallel", "arbitrary"),
                vmem_limit_bytes=vmem_limit,
            ),
            cost_estimate=cost,
        )(x_p, w_p)

    return out2d.reshape(*lead, N)


def init_linear_norm_params(key, in_features, out_features, dtype=jnp.float32):
    """Xavier-uniform init matching nn.init.xavier_uniform_ on a (out, in) weight.

    Returns the weight already transposed to (in_features, out_features).
    """
    bound = math.sqrt(6.0 / (in_features + out_features))
    w = jax.random.uniform(
        key, (out_features, in_features), dtype=dtype, minval=-bound, maxval=bound
    )
    return w.T  # (in_features, out_features)


if __name__ == "__main__":
    key = jax.random.PRNGKey(0)
    k1, k2, k3, k4, k5, k6 = jax.random.split(key, 6)

    # --- Test 1: module-sized shapes (batch=2, seq=8, in=32, out=64), f32,
    #     weight-resident path.
    batch, seq, in_f, out_f = 2, 8, 32, 64
    x = jax.random.normal(k1, (batch, seq, in_f), dtype=jnp.float32)
    w_t = init_linear_norm_params(k2, in_f, out_f)
    y_ref = x @ w_t

    fwd = jax.jit(functools.partial(linear_norm, force_pallas=True))
    y = jax.block_until_ready(fwd(x, w_t))
    assert y.shape == (batch, seq, out_f)
    assert jnp.allclose(y, y_ref, atol=1e-5, rtol=1e-5)

    # Auto path (small-shape XLA bypass) must agree.
    y_auto = jax.block_until_ready(jax.jit(linear_norm)(x, w_t))
    assert jnp.allclose(y_auto, y_ref, atol=1e-5, rtol=1e-5)

    # --- Test 2: general tiled path with a K-reduction (f32 in-place accumulation).
    M2, K2, N2 = 16, 256, 128
    x2 = jax.random.normal(k3, (M2, K2), dtype=jnp.float32)
    w2 = init_linear_norm_params(k4, K2, N2)
    y2 = jax.block_until_ready(jax.jit(functools.partial(
        linear_norm, tk=128, force_pallas=True, allow_resident=False))(x2, w2))
    assert jnp.allclose(y2, x2 @ w2, atol=1e-4, rtol=1e-4)

    # --- Test 3: ragged M (=10) and N (=96) exercise masked boundary blocks and
    #     the in-wrapper K pad (K=32 -> 128); both resident and general paths.
    x3 = jax.random.normal(k5, (2, 5, 32), dtype=jnp.float32)
    w3 = init_linear_norm_params(k6, 32, 96)
    y3_ref = x3 @ w3
    y3a = jax.block_until_ready(jax.jit(functools.partial(
        linear_norm, force_pallas=True))(x3, w3))
    y3b = jax.block_until_ready(jax.jit(functools.partial(
        linear_norm, force_pallas=True, allow_resident=False))(x3, w3))
    assert jnp.allclose(y3a, y3_ref, atol=1e-5, rtol=1e-5)
    assert jnp.allclose(y3b, y3_ref, atol=1e-5, rtol=1e-5)

    # --- Test 4: bf16 inputs/outputs with K-reduction (scratch-accumulator path).
    xb = x2.astype(jnp.bfloat16)
    wb = w2.astype(jnp.bfloat16)
    yb = jax.block_until_ready(jax.jit(functools.partial(
        linear_norm, tk=128, force_pallas=True, allow_resident=False))(xb, wb))
    yb_ref = xb.astype(jnp.float32) @ wb.astype(jnp.float32)
    assert jnp.allclose(yb.astype(jnp.float32), yb_ref, atol=5e-2, rtol=5e-2)

    # --- Test 5: bf16 MXU operands on f32 data (f32 accumulation, f32 output).
    ybf = jax.block_until_ready(jax.jit(functools.partial(
        linear_norm, compute_dtype=jnp.bfloat16, force_pallas=True))(x, w_t))
    assert jnp.allclose(ybf, y_ref, atol=1e-1, rtol=1e-1)

    print("KERNEL_OK")
</pallas_src>

<mosaic_0001>
module attributes {stable_mosaic.version = 11 : i64} {
  func.func @_mm_noacc_kernel(%arg0: i32, %arg1: memref<16x128xf32, #tpu.memory_space<vmem>>, %arg2: memref<128x64xf32, #tpu.memory_space<vmem>>, %arg3: memref<16x64xf32, #tpu.memory_space<vmem>>) attributes {dimension_semantics = [#tpu.dimension_semantics<parallel>], iteration_bounds = array<i64: 1>, scalar_prefetch = 0 : i64, scratch_operands = 0 : i64, tpu.core_type = #tpu.core_type<tc>, window_params = [{transform_indices = @transform_0, window_bounds = array<i64: 16, 128>}, {pipeline_mode = #tpu.pipeline_mode<synchronous>, transform_indices = @transform_1, window_bounds = array<i64: 128, 64>}, {transform_indices = @transform_2, window_bounds = array<i64: 16, 64>}]} {
    %c0 = arith.constant 0 : index
    %c0_0 = arith.constant 0 : index
    %0 = vector.load %arg1[%c0, %c0_0] : memref<16x128xf32, #tpu.memory_space<vmem>>, vector<16x128xf32>
    %c0_1 = arith.constant 0 : index
    %c0_2 = arith.constant 0 : index
    %1 = vector.load %arg2[%c0_1, %c0_2] : memref<128x64xf32, #tpu.memory_space<vmem>>, vector<128x64xf32>
    %cst = arith.constant dense<0.000000e+00> : vector<16x64xf32>
    %2 = tpu.matmul %0, %1, %cst {dimension_numbers = #tpu.dot_dimension_numbers<[1], [0], [0], [1], [0, 0, 1, 1], [], []>} : vector<16x128xf32>, vector<128x64xf32>, vector<16x64xf32> -> vector<16x64xf32>
    %c0_3 = arith.constant 0 : index
    %c0_4 = arith.constant 0 : index
    %3 = vector.load %arg3[%c0_3, %c0_4] : memref<16x64xf32, #tpu.memory_space<vmem>>, vector<16x64xf32>
    tpu.vector_store %arg3[%c0_3, %c0_4], %2 {strides = array<i32>} : memref<16x64xf32, #tpu.memory_space<vmem>>, vector<16x64xf32>,
    return
  }
  func.func @transform_0(%arg0: i32) -> (i32, i32) {
    %c0_i32 = arith.constant 0 : i32
    %c0_i32_0 = arith.constant 0 : i32
    return %arg0, %c0_i32 : i32, i32
  }
  func.func @transform_1(%arg0: i32) -> (i32, i32) {
    %c0_i32 = arith.constant 0 : i32
    %c0_i32_0 = arith.constant 0 : i32
    %c0_i32_1 = arith.constant 0 : i32
    return %c0_i32, %c0_i32_0 : i32, i32
  }
  func.func @transform_2(%arg0: i32) -> (i32, i32) {
    %c0_i32 = arith.constant 0 : i32
    %c0_i32_0 = arith.constant 0 : i32
    return %arg0, %c0_i32 : i32, i32
  }
}

</mosaic_0001>

<llo_original>
// kernel: linear_norm.1
$region0: #{linear_norm.1}
  #allocation0 [shape = 'u32[]', space=smem, size = 0x4, offset = 0x4, fixed_abs, tag = 'smem constant byte address 0x4 - core index']
  #allocation1 [shape = 'u32[144,128]{1,0:T(1,128)}', space=vmem, size = 0x12000, scoped, tag = 'internal scratch']
  %s0 = inlined_call_operand.vmem [shape: f32[16,128], index: 0, kind: input, shape index: {}]
  %s1 = inlined_call_operand.vmem [shape: f32[128,64], index: 1, kind: input, shape index: {}]
  %s2 = inlined_call_operand.hbm [shape: f32[16,64], index: 2, kind: output, shape index: {}]
  %s3 = sld [smem:[#allocation0]]
  $region18: #{linear_norm.1} parent=0
    _
  %s5 = ssub.s32 1, %s3
  %s6 = scalar_select 0, %s5, %s3
  $region1: #{linear_norm.1} parent=0
    #allocation2 [shape = 'u8[8192]{0}', space=vmem, size = 0x2000, scoped, tag = 'output window, operand 0, single buffered']
    #allocation3 [shape = 's32[1]{0}', space=sflag, size = 0x4, scoped, tag = 'scoped memory for linear_norm.1']
    %7 = vsyncpa [#allocation3], 0
    // Predicated region
    $region2: #{linear_norm.1} parent=1 // pred_check
      _
    $region3: #{linear_norm.1} parent=1 // pred_check_branch
      %9 = sbr.rel (0) target = $region5
    $region4: #{linear_norm.1} parent=1 // pred_region
      _
    $region5: #{linear_norm.1} parent=1 // pred_fallthru
      _
    // Predicated region
    $region6: #{linear_norm.1} parent=1 // pred_check
      _
    $region7: #{linear_norm.1} parent=1 // pred_check_branch
      %11 = sbr.rel (0) target = $region9
    $region8: #{linear_norm.1} parent=1 // pred_region
      _
    $region9: #{linear_norm.1} parent=1 // pred_fallthru
      _
    %v12 = vld [vmem:[%s0] sm:$0xff]
    %v13 = vld [vmem:[%s0 + $0x8] sm:$0xff]
    %v14 = vld [vmem:[%s1] sm:$0xff]
    %v15 = vld [vmem:[%s1 + $0x8] sm:$0xff]
    %v16 = vld [vmem:[%s1 + $0x10] sm:$0xff]
    %v17 = vld [vmem:[%s1 + $0x18] sm:$0xff]
    %v18 = vld [vmem:[%s1 + $0x20] sm:$0xff]
    %v19 = vld [vmem:[%s1 + $0x28] sm:$0xff]
    %v20 = vld [vmem:[%s1 + $0x30] sm:$0xff]
    %v21 = vld [vmem:[%s1 + $0x38] sm:$0xff]
    %v22 = vld [vmem:[%s1 + $0x40] sm:$0xff]
    %v23 = vld [vmem:[%s1 + $0x48] sm:$0xff]
    %v24 = vld [vmem:[%s1 + $0x50] sm:$0xff]
    %v25 = vld [vmem:[%s1 + $0x58] sm:$0xff]
    %v26 = vld [vmem:[%s1 + $0x60] sm:$0xff]
    %v27 = vld [vmem:[%s1 + $0x68] sm:$0xff]
    %v28 = vld [vmem:[%s1 + $0x70] sm:$0xff]
    %v29 = vld [vmem:[%s1 + $0x78] sm:$0xff]
    %30 = vmatprep.subr.mxu0 0.0
    %31 = vmatpush1.msra.mxu0 %v14
    %32 = vmatprep.subr.mxu0 0.0
    %33 = vmatpush1.msra.mxu0 %v15
    %34 = vmatprep.subr.mxu0 0.0
    %35 = vmatpush1.msra.mxu0 %v16
    %36 = vmatprep.subr.mxu0 0.0
    %37 = vmatpush1.msra.mxu0 %v17
    %38 = vmatprep.subr.mxu0 0.0
    %39 = vmatpush1.msra.mxu0 %v18
    %40 = vmatprep.subr.mxu0 0.0
    %41 = vmatpush1.msra.mxu0 %v19
    %42 = vmatprep.subr.mxu0 0.0
    %43 = vmatpush1.msra.mxu0 %v20
    %44 = vmatprep.subr.mxu0 0.0
    %45 = vmatpush1.msra.mxu0 %v21
    %46 = vmatprep.subr.mxu0 0.0
    %47 = vmatpush1.msra.mxu0 %v22
    %48 = vmatprep.subr.mxu0 0.0
    %49 = vmatpush1.msra.mxu0 %v23
    %50 = vmatprep.subr.mxu0 0.0
    %51 = vmatpush1.msra.mxu0 %v24
    %52 = vmatprep.subr.mxu0 0.0
    %53 = vmatpush1.msra.mxu0 %v25
    %54 = vmatprep.subr.mxu0 0.0
    %55 = vmatpush1.msra.mxu0 %v26
    %56 = vmatprep.subr.mxu0 0.0
    %57 = vmatpush1.msra.mxu0 %v27
    %58 = vmatprep.subr.mxu0 0.0
    %59 = vmatpush1.msra.mxu0 %v28
    %60 = vmatprep.subr.mxu0 0.0
    %61 = vmatpush1.msra.mxu0 %v29
    %62 = vmatprep.subr.mxu0 0.0
    %63 = vmatpush1.msra.mxu0 0.0
    %64 = vmatprep.subr.mxu0 0.0
    %65 = vmatpush1.msra.mxu0 0.0
    %66 = vmatprep.subr.mxu0 0.0
    %67 = vmatpush1.msra.mxu0 0.0
    %68 = vmatprep.subr.mxu0 0.0
    %69 = vmatpush1.msra.mxu0 0.0
    %70 = vmatprep.subr.mxu0 0.0
    %71 = vmatpush1.msra.mxu0 0.0
    %72 = vmatprep.subr.mxu0 0.0
    %73 = vmatpush1.msra.mxu0 0.0
    %74 = vmatprep.subr.mxu0 0.0
    %75 = vmatpush1.msra.mxu0 0.0
    %76 = vmatprep.subr.mxu0 0.0
    %77 = vmatpush1.msra.mxu0 0.0
    %78 = vmatprep.subr.mxu0 0.0
    %79 = vmatpush1.msra.mxu0 0.0
    %80 = vmatprep.subr.mxu0 0.0
    %81 = vmatpush1.msra.mxu0 0.0
    %82 = vmatprep.subr.mxu0 0.0
    %83 = vmatpush1.msra.mxu0 0.0
    %84 = vmatprep.subr.mxu0 0.0
    %85 = vmatpush1.msra.mxu0 0.0
    %86 = vmatprep.subr.mxu0 0.0
    %87 = vmatpush1.msra.mxu0 0.0
    %88 = vmatprep.subr.mxu0 0.0
    %89 = vmatpush1.msra.mxu0 0.0
    %90 = vmatprep.subr.mxu0 0.0
    %91 = vmatpush1.msra.mxu0 0.0
    %92 = vmatprep.subr.mxu0 0.0
    %93 = vmatpush1.msra.mxu0 0.0
    %94 = vmatprep.mubr.f32.mxu0 0.0
    %95 = vmatmul.mubr.f32.gmra.mrb[0].mxu0 %v12
    %v96 = vpop.f32.mrb[0].mxu0
    %v97 = vadd.f32 0.0, %v96
    %v98 = vpop.f32.mrb[0].mxu0
    %99 = vmatprep.mubr.f32.mxu0 0.0
    %100 = vmatmul.mubr.f32.gmra.mrb[0].mxu0 %v13
    %v101 = vpop.f32.mrb[0].mxu0
    %v102 = vadd.f32 0.0, %v101
    %v103 = vpop.f32.mrb[0].mxu0
    %104 = vdwg.mxu0
    %vm105 = vcmask 523264
    %106 = vst.msk [vmem:[#allocation2] sm:$0xff] %vm105, %v97
    %107 = vst.msk [vmem:[#allocation2 + $0x8] sm:$0xff] %vm105, %v102
    // Predicated region
    $region10: #{linear_norm.1} parent=1 // pred_check
      _
    $region11: #{linear_norm.1} parent=1 // pred_check_branch
      %109 = sbr.rel (0) target = $region13
    $region12: #{linear_norm.1} parent=1 // pred_region
      %s111 = ssub.s32 256, 256
      %112 = vsyncadd [#allocation3], %s111
      %s113 = sshll.u32 [#allocation2], 4
      %s114 = int_to_ptr.vmem [resolvable:$true] %s113
      %119 = dma.vmem_to_hbm [thread:$0]  %s114, 256, %s2, [#allocation3], 128, 128, 8
    $region13: #{linear_norm.1} parent=1 // pred_fallthru
      _
    // Predicated region
    $region14: #{linear_norm.1} parent=1 // pred_check
      _
    $region15: #{linear_norm.1} parent=1 // pred_check_branch
      %121 = sbr.rel (0) target = $region17
    $region16: #{linear_norm.1} parent=1 // pred_region
      %122 = dma.done [#allocation3], 256
    $region17: #{linear_norm.1} parent=1 // pred_fallthru
      _
    %123 = vsyncpa [#allocation3], 1

</llo_original>
